<compile_context>
chip_gen: v5e
topology: v5e:2x2
jax: 0.10.0
libtpu: 0.0.40
codegen_flags: <defaults>
</compile_context>

<pallas_src>
import jax
import jax.numpy as jnp
from jax.experimental import pallas as pl
from jax.experimental.pallas import tpu as pltpu

_SMOOTH = 1e-05
_LANES = 128
_SUBLANES = 8
_MAX_BLOCK_ROWS = 2048  # (2048, 128) f32 = 1 MiB per input per pipeline buffer


def _round_up(v, m):
    return ((v + m - 1) // m) * m


def _tree_fold(parts):
    """Pairwise-sum a list of equally shaped arrays (log-depth adder tree)."""
    while len(parts) > 1:
        nxt = [a + b for a, b in zip(parts[0::2], parts[1::2])]
        if len(parts) % 2:
            nxt.append(parts[-1])
        parts = nxt
    return parts[0]


def _fold_rows_to_tile(v):
    """Reduce a (R, 128) array (R a multiple of 8) to (8, 128) with VPU adds.

    Uses tile-aligned static slices only (no reshapes, no XLU reductions).
    """
    r = v.shape[0]
    # Halve while the result stays a multiple of 8 (keeps slices tile-aligned).
    while r > _SUBLANES and (r // 2) % _SUBLANES == 0:
        h = r // 2
        v = v[:h, :] + v[h:, :]
        r = h
    if r > _SUBLANES:
        parts = [v[k * _SUBLANES:(k + 1) * _SUBLANES, :]
                 for k in range(r // _SUBLANES)]
        v = _tree_fold(parts)
    return v


def _make_kernel(block_rows, valid_rows):
    """Build the per-block partial-sum kernel (block_rows, valid_rows static)."""
    need_mask = (valid_rows % block_rows) != 0

    def kernel(x_ref, t_ref, out_ref):
        x = x_ref[...].astype(jnp.float32)
        t = t_ref[...].astype(jnp.float32)
        if need_mask:
            # Last block extends past the array: mask out-of-range rows.
            row = jax.lax.broadcasted_iota(
                jnp.int32, (block_rows, _LANES), 0)
            mask = (pl.program_id(0) * block_rows + row) < valid_rows
            x = jnp.where(mask, x, 0.0)
            t = jnp.where(mask, t, 0.0)
        out_ref[0, 0] = _fold_rows_to_tile(x * t)   # partial sum(x*t)  (TP)
        out_ref[0, 1] = _fold_rows_to_tile(x)       # partial sum(x)
        out_ref[0, 2] = _fold_rows_to_tile(t)       # partial sum(t)

    return kernel


def binary_fscore_loss(inputs, targets):
    """Pallas equivalent of BinaryF_scoreLoss.forward (returns a scalar)."""
    x = jnp.ravel(inputs)
    t = jnp.ravel(targets)
    n = x.shape[0]

    # Form a lane-dense (rows, 128) view.  Padding (with zeros, which add 0 to
    # every sum) is only needed when n is not a multiple of 128.
    rem = n % _LANES
    if rem:
        pad = _LANES - rem
        x = jnp.pad(x, (0, pad))
        t = jnp.pad(t, (0, pad))
    rows = (n + _LANES - 1) // _LANES
    x2 = x.reshape(rows, _LANES)
    t2 = t.reshape(rows, _LANES)

    block_rows = min(_MAX_BLOCK_ROWS, _round_up(rows, _SUBLANES))
    num_blocks = (rows + block_rows - 1) // block_rows

    partials = pl.pallas_call(
        _make_kernel(block_rows, rows),
        out_shape=jax.ShapeDtypeStruct(
            (num_blocks, 3, _SUBLANES, _LANES), jnp.float32),
        grid_spec=pltpu.PrefetchScalarGridSpec(
            num_scalar_prefetch=0,
            grid=(num_blocks,),
            in_specs=[
                pl.BlockSpec((block_rows, _LANES), lambda i: (i, 0)),
                pl.BlockSpec((block_rows, _LANES), lambda i: (i, 0)),
            ],
            out_specs=pl.BlockSpec(
                (1, 3, _SUBLANES, _LANES), lambda i: (i, 0, 0, 0)),
        ),
        compiler_params=pltpu.CompilerParams(
            dimension_semantics=("parallel",)),
    )(x2, t2)

    # Tiny final combine in plain JAX (also lets v7x keep the grid parallel).
    sums = jnp.sum(partials, axis=(0, 2, 3))
    tp = sums[0]
    fp = sums[1] - tp          # sum((1 - t) * x) = sum(x)   - sum(x*t)
    fn = sums[2] - tp          # sum((1 - x) * t) = sum(t)   - sum(x*t)
    precision = tp / (tp + fp + _SMOOTH)
    recall = tp / (tp + fn + _SMOOTH)
    f_score = 2.0 * precision * recall / (precision + recall + _SMOOTH)
    return 1.0 - f_score


def _reference(inputs, targets):
    x = jnp.ravel(inputs).astype(jnp.float32)
    t = jnp.ravel(targets).astype(jnp.float32)
    TP = jnp.sum(x * t)
    FP = jnp.sum((1.0 - t) * x)
    FN = jnp.sum((1.0 - x) * t)
    precision = TP / (TP + FP + _SMOOTH)
    recall = TP / (TP + FN + _SMOOTH)
    f = 2.0 * precision * recall / (precision + recall + _SMOOTH)
    return 1.0 - f


if __name__ == "__main__":
    key = jax.random.PRNGKey(0)
    k1, k2, k3, k4 = jax.random.split(key, 4)

    # Small NCHW-shaped synthetic inputs: batch=2, channels=4, spatial=16x16.
    inputs = jax.random.uniform(k1, (2, 4, 16, 16), dtype=jnp.float32)
    targets = (
        jax.random.uniform(k2, (2, 4, 16, 16), dtype=jnp.float32) > 0.5
    ).astype(jnp.float32)

    loss = jax.block_until_ready(binary_fscore_loss(inputs, targets))
    ref = jax.block_until_ready(_reference(inputs, targets))
    assert jnp.allclose(loss, ref, atol=1e-5, rtol=1e-5), (loss, ref)

    # Ragged size exercising the pad-to-128 + in-kernel row-mask path.
    inputs2 = jax.random.uniform(k3, (2, 3, 7, 11), dtype=jnp.float32)
    targets2 = (
        jax.random.uniform(k4, (2, 3, 7, 11), dtype=jnp.float32) > 0.5
    ).astype(jnp.float32)
    loss2 = jax.block_until_ready(binary_fscore_loss(inputs2, targets2))
    ref2 = jax.block_until_ready(_reference(inputs2, targets2))
    assert jnp.allclose(loss2, ref2, atol=1e-5, rtol=1e-5), (loss2, ref2)

    print("KERNEL_OK")
</pallas_src>

<mosaic_0001>
module attributes {stable_mosaic.version = 11 : i64} {
  func.func @kernel(%arg0: i32, %arg1: memref<16x128xf32, #tpu.memory_space<vmem>>, %arg2: memref<16x128xf32, #tpu.memory_space<vmem>>, %arg3: memref<1x3x8x128xf32, #tpu.memory_space<vmem>>) attributes {dimension_semantics = [#tpu.dimension_semantics<parallel>], iteration_bounds = array<i64: 1>, scalar_prefetch = 0 : i64, scratch_operands = 0 : i64, tpu.core_type = #tpu.core_type<tc>, window_params = [{transform_indices = @transform_0, window_bounds = array<i64: 16, 128>}, {transform_indices = @transform_1, window_bounds = array<i64: 16, 128>}, {transform_indices = @transform_2, window_bounds = array<i64: 1, 3, 8, 128>}]} {
    %c0 = arith.constant 0 : index
    %c0_0 = arith.constant 0 : index
    %0 = vector.load %arg1[%c0, %c0_0] : memref<16x128xf32, #tpu.memory_space<vmem>>, vector<16x128xf32>
    %c0_1 = arith.constant 0 : index
    %c0_2 = arith.constant 0 : index
    %1 = vector.load %arg2[%c0_1, %c0_2] : memref<16x128xf32, #tpu.memory_space<vmem>>, vector<16x128xf32>
    %2 = arith.mulf %0, %1 : vector<16x128xf32>
    %3 = vector.extract_strided_slice %2 {offsets = [0, 0], sizes = [8, 128], strides = [1, 1]} : vector<16x128xf32> to vector<8x128xf32>
    %4 = vector.extract_strided_slice %2 {offsets = [8, 0], sizes = [8, 128], strides = [1, 1]} : vector<16x128xf32> to vector<8x128xf32>
    %5 = arith.addf %3, %4 : vector<8x128xf32>
    %c0_3 = arith.constant 0 : index
    %c0_4 = arith.constant 0 : index
    %c0_5 = arith.constant 0 : index
    %c0_6 = arith.constant 0 : index
    %6 = vector.load %arg3[%c0_3, %c0_4, %c0_5, %c0_6] : memref<1x3x8x128xf32, #tpu.memory_space<vmem>>, vector<1x1x8x128xf32>
    %7 = vector.shape_cast %6 : vector<1x1x8x128xf32> to vector<8x128xf32>
    %8 = vector.shape_cast %5 : vector<8x128xf32> to vector<1x1x8x128xf32>
    tpu.vector_store %arg3[%c0_3, %c0_4, %c0_5, %c0_6], %8 {strides = array<i32>} : memref<1x3x8x128xf32, #tpu.memory_space<vmem>>, vector<1x1x8x128xf32>,
    %9 = vector.extract_strided_slice %0 {offsets = [0, 0], sizes = [8, 128], strides = [1, 1]} : vector<16x128xf32> to vector<8x128xf32>
    %10 = vector.extract_strided_slice %0 {offsets = [8, 0], sizes = [8, 128], strides = [1, 1]} : vector<16x128xf32> to vector<8x128xf32>
    %11 = arith.addf %9, %10 : vector<8x128xf32>
    %c0_7 = arith.constant 0 : index
    %c1 = arith.constant 1 : index
    %c0_8 = arith.constant 0 : index
    %c0_9 = arith.constant 0 : index
    %12 = vector.load %arg3[%c0_7, %c1, %c0_8, %c0_9] : memref<1x3x8x128xf32, #tpu.memory_space<vmem>>, vector<1x1x8x128xf32>
    %13 = vector.shape_cast %12 : vector<1x1x8x128xf32> to vector<8x128xf32>
    %14 = vector.shape_cast %11 : vector<8x128xf32> to vector<1x1x8x128xf32>
    tpu.vector_store %arg3[%c0_7, %c1, %c0_8, %c0_9], %14 {strides = array<i32>} : memref<1x3x8x128xf32, #tpu.memory_space<vmem>>, vector<1x1x8x128xf32>,
    %15 = vector.extract_strided_slice %1 {offsets = [0, 0], sizes = [8, 128], strides = [1, 1]} : vector<16x128xf32> to vector<8x128xf32>
    %16 = vector.extract_strided_slice %1 {offsets = [8, 0], sizes = [8, 128], strides = [1, 1]} : vector<16x128xf32> to vector<8x128xf32>
    %17 = arith.addf %15, %16 : vector<8x128xf32>
    %c0_10 = arith.constant 0 : index
    %c2 = arith.constant 2 : index
    %c0_11 = arith.constant 0 : index
    %c0_12 = arith.constant 0 : index
    %18 = vector.load %arg3[%c0_10, %c2, %c0_11, %c0_12] : memref<1x3x8x128xf32, #tpu.memory_space<vmem>>, vector<1x1x8x128xf32>
    %19 = vector.shape_cast %18 : vector<1x1x8x128xf32> to vector<8x128xf32>
    %20 = vector.shape_cast %17 : vector<8x128xf32> to vector<1x1x8x128xf32>
    tpu.vector_store %arg3[%c0_10, %c2, %c0_11, %c0_12], %20 {strides = array<i32>} : memref<1x3x8x128xf32, #tpu.memory_space<vmem>>, vector<1x1x8x128xf32>,
    return
  }
  func.func @transform_0(%arg0: i32) -> (i32, i32) {
    %c0_i32 = arith.constant 0 : i32
    %c0_i32_0 = arith.constant 0 : i32
    return %arg0, %c0_i32 : i32, i32
  }
  func.func @transform_1(%arg0: i32) -> (i32, i32) {
    %c0_i32 = arith.constant 0 : i32
    %c0_i32_0 = arith.constant 0 : i32
    return %arg0, %c0_i32 : i32, i32
  }
  func.func @transform_2(%arg0: i32) -> (i32, i32, i32, i32) {
    %c0_i32 = arith.constant 0 : i32
    %c0_i32_0 = arith.constant 0 : i32
    %c0_i32_1 = arith.constant 0 : i32
    %c0_i32_2 = arith.constant 0 : i32
    return %arg0, %c0_i32, %c0_i32_0, %c0_i32_1 : i32, i32, i32, i32
  }
}

</mosaic_0001>

<llo_original>
// kernel: tpu_custom_call.1
$region0: #{tpu_custom_call.1}
  #allocation0 [shape = 'u32[]', space=smem, size = 0x4, offset = 0x4, fixed_abs, tag = 'smem constant byte address 0x4 - core index']
  #allocation1 [shape = 'u32[72,128]{1,0:T(1,128)}', space=vmem, size = 0x9000, scoped, tag = 'internal scratch']
  %s0 = inlined_call_operand.hbm [shape: f32[16,128], index: 0, kind: input, shape index: {}]
  %s1 = inlined_call_operand.hbm [shape: f32[16,128], index: 1, kind: input, shape index: {}]
  %s2 = inlined_call_operand.hbm [shape: f32[1,3,8,128], index: 2, kind: output, shape index: {}]
  %s3 = sld [smem:[#allocation0]]
  $region26: #{tpu_custom_call.1} parent=0
    _
  %s5 = ssub.s32 1, %s3
  %s6 = scalar_select 0, %s5, %s3
  $region1: #{tpu_custom_call.1} parent=0
    #allocation2 [shape = 'u8[8192]{0}', space=vmem, size = 0x2000, scoped, tag = 'input window, operand 0, single buffered']
    #allocation3 [shape = 's32[1]{0}', space=sflag, size = 0x4, scoped, tag = 'scoped memory for tpu_custom_call.1']
    #allocation4 [shape = 's32[1]{0}', space=sflag, size = 0x4, scoped, tag = 'scoped memory for tpu_custom_call.1']
    #allocation5 [shape = 'u8[8192]{0}', space=vmem, size = 0x2000, scoped, tag = 'input window, operand 1, single buffered']
    #allocation6 [shape = 's32[1]{0}', space=sflag, size = 0x4, scoped, tag = 'scoped memory for tpu_custom_call.1']
    #allocation7 [shape = 'u8[12288]{0}', space=vmem, size = 0x3000, scoped, tag = 'output window, operand 0, single buffered']
    %7 = vsyncpa [#allocation3], 0
    %8 = vsyncpa [#allocation6], 0
    %9 = vsyncpa [#allocation4], 0
    // Predicated region
    $region2: #{tpu_custom_call.1} parent=1 // pred_check
      _
    $region3: #{tpu_custom_call.1} parent=1 // pred_check_branch
      %11 = sbr.rel (0) target = $region5
    $region4: #{tpu_custom_call.1} parent=1 // pred_region
      %13 = vsyncadd [#allocation3], 0
      %s14 = sshll.u32 %s0, 4
      %s15 = int_to_ptr.hbm [resolvable:$true] %s14
      %s16 = sshll.u32 [#allocation2], 4
      %s17 = int_to_ptr.vmem [resolvable:$true] %s16
      %22 = dma.hbm_to_vmem [thread:$0]  %s15, 256, %s17, [#allocation3], 128, 128, 8
    $region5: #{tpu_custom_call.1} parent=1 // pred_fallthru
      _
    // Predicated region
    $region6: #{tpu_custom_call.1} parent=1 // pred_check
      _
    $region7: #{tpu_custom_call.1} parent=1 // pred_check_branch
      %24 = sbr.rel (0) target = $region9
    $region8: #{tpu_custom_call.1} parent=1 // pred_region
      %26 = vsyncadd [#allocation6], 0
      %s27 = sshll.u32 %s1, 4
      %s28 = int_to_ptr.hbm [resolvable:$true] %s27
      %s29 = sshll.u32 [#allocation5], 4
      %s30 = int_to_ptr.vmem [resolvable:$true] %s29
      %35 = dma.hbm_to_vmem [thread:$0]  %s28, 256, %s30, [#allocation6], 128, 128, 8
    $region9: #{tpu_custom_call.1} parent=1 // pred_fallthru
      _
    // Predicated region
    $region10: #{tpu_custom_call.1} parent=1 // pred_check
      _
    $region11: #{tpu_custom_call.1} parent=1 // pred_check_branch
      %37 = sbr.rel (0) target = $region13
    $region12: #{tpu_custom_call.1} parent=1 // pred_region
      %39 = dma.done [#allocation3], 256
    $region13: #{tpu_custom_call.1} parent=1 // pred_fallthru
      _
    // Predicated region
    $region14: #{tpu_custom_call.1} parent=1 // pred_check
      _
    $region15: #{tpu_custom_call.1} parent=1 // pred_check_branch
      %41 = sbr.rel (0) target = $region17
    $region16: #{tpu_custom_call.1} parent=1 // pred_region
      %43 = dma.done [#allocation6], 256
    $region17: #{tpu_custom_call.1} parent=1 // pred_fallthru
      _
    %v44 = vld [vmem:[#allocation2] sm:$0xff]
    %v45 = vld [vmem:[#allocation2 + $0x8] sm:$0xff]
    %v46 = vld [vmem:[#allocation5] sm:$0xff]
    %v47 = vld [vmem:[#allocation5 + $0x8] sm:$0xff]
    %v48 = vmul.f32 %v44, %v46
    %v49 = vmul.f32 %v45, %v47
    %v50 = vadd.f32 %v48, %v49
    %51 = vst [vmem:[#allocation7] sm:$0xff] %v50
    %v52 = vadd.f32 %v44, %v45
    %s53 = scalar_lea.vmem [#allocation7], 8
    %54 = vst [vmem:[%s53] sm:$0xff] %v52
    %v55 = vadd.f32 %v46, %v47
    %s56 = scalar_lea.vmem [#allocation7], 16
    %57 = vst [vmem:[%s56] sm:$0xff] %v55
    // Predicated region
    $region18: #{tpu_custom_call.1} parent=1 // pred_check
      _
    $region19: #{tpu_custom_call.1} parent=1 // pred_check_branch
      %59 = sbr.rel (0) target = $region21
    $region20: #{tpu_custom_call.1} parent=1 // pred_region
      %61 = vsyncadd [#allocation4], 0
      %s62 = sshll.u32 [#allocation7], 4
      %s63 = int_to_ptr.vmem [resolvable:$true] %s62
      %s64 = sshll.u32 %s2, 4
      %s65 = int_to_ptr.hbm [resolvable:$true] %s64
      %70 = dma.vmem_to_hbm [thread:$0]  %s63, 384, %s65, [#allocation4], 128, 128, 8
    $region21: #{tpu_custom_call.1} parent=1 // pred_fallthru
      _
    // Predicated region
    $region22: #{tpu_custom_call.1} parent=1 // pred_check
      _
    $region23: #{tpu_custom_call.1} parent=1 // pred_check_branch
      %72 = sbr.rel (0) target = $region25
    $region24: #{tpu_custom_call.1} parent=1 // pred_region
      %74 = dma.done [#allocation4], 384
    $region25: #{tpu_custom_call.1} parent=1 // pred_fallthru
      _
    %75 = vsyncpa [#allocation3], 1
    %76 = vsyncpa [#allocation6], 1
    %77 = vsyncpa [#allocation4], 1

</llo_original>
